<compile_context>
chip_gen: v5e
topology: v5e:2x2
jax: 0.10.0
libtpu: 0.0.40
codegen_flags: <defaults>
</compile_context>

<pallas_src>
import functools

import jax
import jax.numpy as jnp
from jax.experimental import pallas as pl
from jax.experimental.pallas import tpu as pltpu


def _round_up(x, m):
    return -(-x // m) * m


def _dice_kernel(pred_ref, targ_ref, out_ref, inter_acc, pred_acc, targ_acc, *,
                 smooth, square, mode, hw, t_tile, num_k_inner, num_classes,
                 mask_from):
    ko = pl.program_id(1)
    ki = pl.program_id(2)
    nki = pl.num_programs(2)

    @pl.when(ki == 0)
    def _zero():
        inter_acc[...] = jnp.zeros_like(inter_acc)
        pred_acc[...] = jnp.zeros_like(pred_acc)
        targ_acc[...] = jnp.zeros_like(targ_acc)

    # Cast in-kernel (inputs keep their HBM dtype).
    t = targ_ref[0, 0].astype(jnp.float32)                     # (t_tile, 128)

    if mode == "sigmoid":
        # Only channel 0 was DMA'd (block channel dim == 1).
        prob = jax.nn.sigmoid(pred_ref[0, 0].astype(jnp.float32))
    elif mode == "softmax2":
        p0 = pred_ref[0, 0].astype(jnp.float32)
        p1 = pred_ref[0, 1].astype(jnp.float32)
        prob = jax.nn.sigmoid(p1 - p0)                          # softmax class 1
    else:
        # Single-pass softmax class 1: 1 / (1 + sum_{j!=1} exp(p_j - p_1)).
        # No channel-max pass, C-1 exps, no (C, t_tile, 128) temporaries.
        # Overflow of exp() to +inf correctly yields prob == 0.
        p1 = pred_ref[0, 1].astype(jnp.float32)
        denom = jnp.ones_like(p1)                               # exp(0) for j==1
        for j in range(num_classes):
            if j == 1:
                continue
            denom = denom + jnp.exp(pred_ref[0, j].astype(jnp.float32) - p1)
        prob = pl.reciprocal(denom, approx=False)               # exact

    acc_rows = inter_acc.shape[0]

    def _part(x):
        # (t_tile,128) -> (acc_rows,128): pure VPU adds across vreg rows,
        # no cross-lane XLU reduction in the hot loop.
        return x.reshape(t_tile // acc_rows, acc_rows, 128).sum(axis=0)

    def _accumulate(prob_v, t_v):
        inter_acc[...] += _part(prob_v * t_v)
        pred_acc[...] += _part(prob_v * prob_v if square else prob_v)
        targ_acc[...] += _part(t_v)

    if mask_from is None:
        # No spatial padding / clipping anywhere: always the fast path.
        _accumulate(prob, t)
    else:
        k_global = ko * num_k_inner + ki

        @pl.when(k_global < mask_from)
        def _interior():                       # unmasked hot path
            _accumulate(prob, t)

        @pl.when(k_global >= mask_from)
        def _tail():                           # only the last / empty tiles
            row = jax.lax.broadcasted_iota(jnp.int32, (t_tile, 128), 0)
            lane = jax.lax.broadcasted_iota(jnp.int32, (t_tile, 128), 1)
            gidx = (k_global * t_tile + row) * 128 + lane
            valid = gidx < hw
            _accumulate(jnp.where(valid, prob, 0.0), jnp.where(valid, t, 0.0))

    @pl.when(ki == nki - 1)
    def _finish():
        i_s = jnp.sum(inter_acc[...])
        p_s = jnp.sum(pred_acc[...])
        t_s = jnp.sum(targ_acc[...])
        rows = jax.lax.broadcasted_iota(jnp.int32, out_ref.shape[2:], 0)
        slab = jnp.where(rows == 0, i_s,
                         jnp.where(rows == 1, p_s,
                                   jnp.where(rows == 2, t_s, 0.0)))
        out_ref[...] = slab.astype(out_ref.dtype)[None, None]


def dice_loss(prediction, target, *, smooth=1.0, use_sigmoid=False, square=True,
              max_tile_rows=2048, vmem_input_budget_bytes=8 * 1024 * 1024):
    """prediction: (N, C, H, W); target: (N, H, W), any real/int dtype."""
    N, C, H, W = prediction.shape
    if not use_sigmoid and C < 2:
        raise ValueError("softmax mode requires at least 2 channels (uses class 1)")
    HW = H * W
    HW128 = _round_up(HW, 128)
    T = HW128 // 128

    # Keep native dtypes; casting happens in-kernel.
    pred_flat = prediction.reshape(N, C, HW)
    targ_flat = target.reshape(N, 1, HW)
    if HW128 != HW:
        # One-time zero pad (extra HBM pass) so the spatial axis is lane-dense.
        # Prefer H*W % 128 == 0 in callers to avoid this.
        pad = HW128 - HW
        pred_flat = jnp.pad(pred_flat, ((0, 0), (0, 0), (0, pad)))
        targ_flat = jnp.pad(targ_flat, ((0, 0), (0, 0), (0, pad)))
    pred4 = pred_flat.reshape(N, C, T, 128)
    targ4 = targ_flat.reshape(N, 1, T, 128)

    if use_sigmoid:
        mode = "sigmoid"
        pred_block_c = 1          # stream only channel 0 from HBM
    elif C == 2:
        mode = "softmax2"
        pred_block_c = 2
    else:
        mode = "softmax"
        pred_block_c = C

    # ---- tile sizing: C-, dtype- and VMEM-budget aware ----------------------
    pred_isz = jnp.dtype(prediction.dtype).itemsize
    targ_isz = jnp.dtype(target.dtype).itemsize
    # Packed sub-32-bit dtypes tile as (16,128)/(32,128) sublane groups.
    sub_m = max(8, 32 // max(1, pred_isz), 32 // max(1, targ_isz))

    bytes_per_row = 128 * (pred_block_c * pred_isz + targ_isz)
    budget_rows = max(sub_m, int(vmem_input_budget_bytes) // (2 * bytes_per_row))
    max_rows = min(int(max_tile_rows), int(budget_rows))
    max_rows = max(sub_m, (max_rows // sub_m) * sub_m)

    if T <= max_rows:
        t_tile = T
        num_k_valid = 1
    else:
        num_k_valid = -(-T // max_rows)
        t_tile = _round_up(-(-T // num_k_valid), sub_m)
        num_k_valid = -(-T // t_tile)

    acc_rows = 8 if t_tile % 8 == 0 else t_tile

    # Split the spatial axis across a second "parallel" grid axis when the
    # batch alone cannot feed both v7x TensorCores (N == 1 or odd N).
    k_outer = 2 if (N % 2 == 1 and num_k_valid >= 2) else 1
    num_k_inner = -(-num_k_valid // k_outer)

    last_tile_partial = (HW128 != HW) or (num_k_valid * t_tile != T)
    has_empty = k_outer * num_k_inner > num_k_valid
    if last_tile_partial:
        mask_from = num_k_valid - 1
    elif has_empty:
        mask_from = num_k_valid
    else:
        mask_from = None

    nkv = num_k_valid
    nki = num_k_inner

    def _spatial_block(ko, ki):
        # Clamp so the (rare) fully-empty trailing tile re-reads the last valid
        # tile; its contribution is zeroed by the in-kernel mask.
        return jnp.minimum(ko * nki + ki, nkv - 1)

    pred_spec = pl.BlockSpec((1, pred_block_c, t_tile, 128),
                             lambda i, ko, ki: (i, 0, _spatial_block(ko, ki), 0))
    targ_spec = pl.BlockSpec((1, 1, t_tile, 128),
                             lambda i, ko, ki: (i, 0, _spatial_block(ko, ki), 0))
    out_spec = pl.BlockSpec((1, 1, 8, 128), lambda i, ko, ki: (i, ko, 0, 0))

    # Explicit VMEM ceiling: double-buffered pred+target blocks + scratch + margin.
    block_bytes = 2 * t_tile * bytes_per_row
    scratch_bytes = 3 * acc_rows * 128 * 4 + 2 * 8 * 128 * 4
    vmem_limit = int(min(48 * 1024 * 1024,
                         max(16 * 1024 * 1024,
                             block_bytes + scratch_bytes + 4 * 1024 * 1024)))

    n_exp = 1 if mode in ("sigmoid", "softmax2") else (C - 1)
    cost = pl.CostEstimate(
        flops=int(5 * N * HW),
        transcendentals=int(N * HW * n_exp),
        bytes_accessed=int(N * HW128 * (pred_block_c * pred_isz + targ_isz)
                           + N * k_outer * 8 * 128 * 4))

    kernel = functools.partial(
        _dice_kernel, smooth=float(smooth), square=bool(square), mode=mode,
        hw=HW, t_tile=t_tile, num_k_inner=num_k_inner, num_classes=C,
        mask_from=mask_from)

    parts_slab = pl.pallas_call(
        kernel,
        out_shape=jax.ShapeDtypeStruct((N, k_outer, 8, 128), jnp.float32),
        grid_spec=pltpu.PrefetchScalarGridSpec(
            num_scalar_prefetch=0,
            grid=(N, k_outer, num_k_inner),
            in_specs=[pred_spec, targ_spec],
            out_specs=out_spec,
            scratch_shapes=[pltpu.VMEM((acc_rows, 128), jnp.float32)] * 3,
        ),
        compiler_params=pltpu.CompilerParams(
            dimension_semantics=("parallel", "parallel", "arbitrary"),
            vmem_limit_bytes=vmem_limit),
        cost_estimate=cost,
    )(pred4, targ4)

    # Rows 0/1/2 of each (i, ko) slab hold intersection / pred-sum / target-sum.
    parts = parts_slab[:, :, :3, 0]          # (N, k_outer, 3)
    sums = jnp.sum(parts, axis=1)            # (N, 3)
    i_s, p_s, t_s = sums[:, 0], sums[:, 1], sums[:, 2]
    dice = (2.0 * i_s + smooth) / (p_s + t_s + smooth)
    return 1.0 - jnp.sum(dice) / N


def _dice_loss_ref(prediction, target, *, smooth=1.0, use_sigmoid=False,
                   square=True):
    prediction = prediction.astype(jnp.float32)
    target = target.astype(jnp.float32)
    N = prediction.shape[0]
    if use_sigmoid:
        p = jax.nn.sigmoid(prediction)[:, 0]
    else:
        p = jax.nn.softmax(prediction, axis=1)[:, 1]
    p_flat = p.reshape(N, -1)
    t_flat = target.reshape(N, -1)
    molecular = 2.0 * jnp.sum(p_flat * t_flat, axis=1) + smooth
    if square:
        p_flat = p_flat ** 2
    denominator = jnp.sum(p_flat, axis=1) + jnp.sum(t_flat, axis=1) + smooth
    return 1.0 - jnp.sum(molecular / denominator) / N


if __name__ == "__main__":
    key = jax.random.PRNGKey(0)
    k1, k2 = jax.random.split(key)

    # Main case: softmax path, square=True (default module config).
    N, C, H, W = 2, 4, 16, 16
    prediction = jax.random.normal(k1, (N, C, H, W), dtype=jnp.float32)
    target = (jax.random.uniform(k2, (N, H, W)) > 0.5).astype(jnp.int32)

    loss = dice_loss(prediction, target, smooth=1.0, use_sigmoid=False,
                     square=True)
    loss = jax.block_until_ready(loss)
    ref = _dice_loss_ref(prediction, target, smooth=1.0, use_sigmoid=False,
                         square=True)
    assert jnp.allclose(loss, ref, atol=1e-5, rtol=1e-5), (loss, ref)

    # Extra checks: sigmoid path (channel-0-only DMA), C==2 fast path,
    # non-multiple-of-128 HW (masked tail), multi-tile + N==1 k_outer split,
    # and a bf16-input case (packed sublane rounding).
    checks = [
        dict(shape=(2, 4, 16, 16), use_sigmoid=True,  square=False, rows=2048,
             dtype=jnp.float32),
        dict(shape=(2, 2, 16, 16), use_sigmoid=False, square=True,  rows=2048,
             dtype=jnp.float32),
        dict(shape=(2, 3, 10, 10), use_sigmoid=False, square=True,  rows=2048,
             dtype=jnp.float32),
        dict(shape=(1, 4, 48, 48), use_sigmoid=False, square=False, rows=8,
             dtype=jnp.float32),
        dict(shape=(1, 4, 64, 64), use_sigmoid=False, square=True,  rows=16,
             dtype=jnp.bfloat16),
    ]
    for idx, cfg in enumerate(checks):
        n, c, h, w = cfg["shape"]
        kp, kt = jax.random.split(jax.random.PRNGKey(idx + 1))
        pred = jax.random.normal(kp, (n, c, h, w)).astype(cfg["dtype"])
        targ = (jax.random.uniform(kt, (n, h, w)) > 0.5).astype(jnp.int32)
        got = dice_loss(pred, targ, smooth=1.0, use_sigmoid=cfg["use_sigmoid"],
                        square=cfg["square"], max_tile_rows=cfg["rows"])
        got = jax.block_until_ready(got)
        want = _dice_loss_ref(pred, targ, smooth=1.0,
                              use_sigmoid=cfg["use_sigmoid"],
                              square=cfg["square"])
        tol = 1e-5 if cfg["dtype"] == jnp.float32 else 2e-3
        assert jnp.allclose(got, want, atol=tol, rtol=tol), (cfg, got, want)

    print("KERNEL_OK")
</pallas_src>

<mosaic_0001>
module attributes {stable_mosaic.version = 11 : i64} {
  func.func @_dice_kernel(%arg0: i32, %arg1: i32, %arg2: i32, %arg3: memref<1x4x2x128xf32, #tpu.memory_space<vmem>>, %arg4: memref<1x1x2x128xi32, #tpu.memory_space<vmem>>, %arg5: memref<1x1x8x128xf32, #tpu.memory_space<vmem>>, %arg6: memref<2x128xf32, #tpu.memory_space<vmem>>, %arg7: memref<2x128xf32, #tpu.memory_space<vmem>>, %arg8: memref<2x128xf32, #tpu.memory_space<vmem>>) attributes {dimension_semantics = [#tpu.dimension_semantics<parallel>, #tpu.dimension_semantics<parallel>, #tpu.dimension_semantics<arbitrary>], iteration_bounds = array<i64: 2, 1, 1>, scalar_prefetch = 0 : i64, scratch_operands = 3 : i64, tpu.core_type = #tpu.core_type<tc>, window_params = [{transform_indices = @transform_0, window_bounds = array<i64: 1, 4, 2, 128>}, {transform_indices = @transform_1, window_bounds = array<i64: 1, 1, 2, 128>}, {transform_indices = @transform_2, window_bounds = array<i64: 1, 1, 8, 128>}]} {
    %c0_i32 = arith.constant 0 : i32
    %0 = arith.cmpi eq, %arg2, %c0_i32 : i32
    %1 = arith.extui %0 : i1 to i32
    %c0_i32_0 = arith.constant 0 : i32
    %2 = arith.cmpi ne, %1, %c0_i32_0 : i32
    scf.if %2 {
      %cst_34 = arith.constant 0.000000e+00 : f32
      %45 = vector.broadcast %cst_34 : f32 to vector<2x128xf32>
      %c0_35 = arith.constant 0 : index
      %c0_36 = arith.constant 0 : index
      %46 = vector.load %arg6[%c0_35, %c0_36] : memref<2x128xf32, #tpu.memory_space<vmem>>, vector<2x128xf32>
      tpu.vector_store %arg6[%c0_35, %c0_36], %45 {strides = array<i32>} : memref<2x128xf32, #tpu.memory_space<vmem>>, vector<2x128xf32>,
      %cst_37 = arith.constant 0.000000e+00 : f32
      %47 = vector.broadcast %cst_37 : f32 to vector<2x128xf32>
      %c0_38 = arith.constant 0 : index
      %c0_39 = arith.constant 0 : index
      %48 = vector.load %arg7[%c0_38, %c0_39] : memref<2x128xf32, #tpu.memory_space<vmem>>, vector<2x128xf32>
      tpu.vector_store %arg7[%c0_38, %c0_39], %47 {strides = array<i32>} : memref<2x128xf32, #tpu.memory_space<vmem>>, vector<2x128xf32>,
      %cst_40 = arith.constant 0.000000e+00 : f32
      %49 = vector.broadcast %cst_40 : f32 to vector<2x128xf32>
      %c0_41 = arith.constant 0 : index
      %c0_42 = arith.constant 0 : index
      %50 = vector.load %arg8[%c0_41, %c0_42] : memref<2x128xf32, #tpu.memory_space<vmem>>, vector<2x128xf32>
      tpu.vector_store %arg8[%c0_41, %c0_42], %49 {strides = array<i32>} : memref<2x128xf32, #tpu.memory_space<vmem>>, vector<2x128xf32>,
    } else {
    }
    %c0 = arith.constant 0 : index
    %c0_1 = arith.constant 0 : index
    %c0_2 = arith.constant 0 : index
    %c0_3 = arith.constant 0 : index
    %3 = vector.load %arg4[%c0, %c0_1, %c0_2, %c0_3] : memref<1x1x2x128xi32, #tpu.memory_space<vmem>>, vector<1x1x2x128xi32>
    %4 = vector.shape_cast %3 : vector<1x1x2x128xi32> to vector<2x128xi32>
    %5 = arith.sitofp %4 : vector<2x128xi32> to vector<2x128xf32>
    %c0_4 = arith.constant 0 : index
    %c1 = arith.constant 1 : index
    %c0_5 = arith.constant 0 : index
    %c0_6 = arith.constant 0 : index
    %6 = vector.load %arg3[%c0_4, %c1, %c0_5, %c0_6] : memref<1x4x2x128xf32, #tpu.memory_space<vmem>>, vector<1x1x2x128xf32>
    %7 = vector.shape_cast %6 : vector<1x1x2x128xf32> to vector<2x128xf32>
    %cst = arith.constant 1.000000e+00 : f32
    %8 = vector.broadcast %cst : f32 to vector<2x128xf32>
    %c0_7 = arith.constant 0 : index
    %c0_8 = arith.constant 0 : index
    %c0_9 = arith.constant 0 : index
    %c0_10 = arith.constant 0 : index
    %9 = vector.load %arg3[%c0_7, %c0_8, %c0_9, %c0_10] : memref<1x4x2x128xf32, #tpu.memory_space<vmem>>, vector<1x1x2x128xf32>
    %10 = vector.shape_cast %9 : vector<1x1x2x128xf32> to vector<2x128xf32>
    %11 = arith.subf %10, %7 : vector<2x128xf32>
    %12 = math.exp %11 : vector<2x128xf32>
    %13 = arith.addf %8, %12 : vector<2x128xf32>
    %c0_11 = arith.constant 0 : index
    %c2 = arith.constant 2 : index
    %c0_12 = arith.constant 0 : index
    %c0_13 = arith.constant 0 : index
    %14 = vector.load %arg3[%c0_11, %c2, %c0_12, %c0_13] : memref<1x4x2x128xf32, #tpu.memory_space<vmem>>, vector<1x1x2x128xf32>
    %15 = vector.shape_cast %14 : vector<1x1x2x128xf32> to vector<2x128xf32>
    %16 = arith.subf %15, %7 : vector<2x128xf32>
    %17 = math.exp %16 : vector<2x128xf32>
    %18 = arith.addf %13, %17 : vector<2x128xf32>
    %c0_14 = arith.constant 0 : index
    %c3 = arith.constant 3 : index
    %c0_15 = arith.constant 0 : index
    %c0_16 = arith.constant 0 : index
    %19 = vector.load %arg3[%c0_14, %c3, %c0_15, %c0_16] : memref<1x4x2x128xf32, #tpu.memory_space<vmem>>, vector<1x1x2x128xf32>
    %20 = vector.shape_cast %19 : vector<1x1x2x128xf32> to vector<2x128xf32>
    %21 = arith.subf %20, %7 : vector<2x128xf32>
    %22 = math.exp %21 : vector<2x128xf32>
    %23 = arith.addf %18, %22 : vector<2x128xf32>
    %24 = tpu.reciprocal %23 : vector<2x128xf32> -> vector<2x128xf32>
    %c0_17 = arith.constant 0 : index
    %c0_18 = arith.constant 0 : index
    %25 = vector.load %arg6[%c0_17, %c0_18] : memref<2x128xf32, #tpu.memory_space<vmem>>, vector<2x128xf32>
    %26 = arith.mulf %24, %5 : vector<2x128xf32>
    %27 = vector.shape_cast %26 : vector<2x128xf32> to vector<1x2x128xf32>
    %cst_19 = arith.constant dense<0.000000e+00> : vector<2x128xf32>
    %28 = vector.multi_reduction <add>, %27, %cst_19 [0] : vector<1x2x128xf32> to vector<2x128xf32>
    %29 = arith.addf %25, %28 : vector<2x128xf32>
    %c0_20 = arith.constant 0 : index
    %c0_21 = arith.constant 0 : index
    %30 = vector.load %arg6[%c0_20, %c0_21] : memref<2x128xf32, #tpu.memory_space<vmem>>, vector<2x128xf32>
    tpu.vector_store %arg6[%c0_20, %c0_21], %29 {strides = array<i32>} : memref<2x128xf32, #tpu.memory_space<vmem>>, vector<2x128xf32>,
    %c0_22 = arith.constant 0 : index
    %c0_23 = arith.constant 0 : index
    %31 = vector.load %arg7[%c0_22, %c0_23] : memref<2x128xf32, #tpu.memory_space<vmem>>, vector<2x128xf32>
    %32 = arith.mulf %24, %24 : vector<2x128xf32>
    %33 = vector.shape_cast %32 : vector<2x128xf32> to vector<1x2x128xf32>
    %cst_24 = arith.constant dense<0.000000e+00> : vector<2x128xf32>
    %34 = vector.multi_reduction <add>, %33, %cst_24 [0] : vector<1x2x128xf32> to vector<2x128xf32>
    %35 = arith.addf %31, %34 : vector<2x128xf32>
    %c0_25 = arith.constant 0 : index
    %c0_26 = arith.constant 0 : index
    %36 = vector.load %arg7[%c0_25, %c0_26] : memref<2x128xf32, #tpu.memory_space<vmem>>, vector<2x128xf32>
    tpu.vector_store %arg7[%c0_25, %c0_26], %35 {strides = array<i32>} : memref<2x128xf32, #tpu.memory_space<vmem>>, vector<2x128xf32>,
    %c0_27 = arith.constant 0 : index
    %c0_28 = arith.constant 0 : index
    %37 = vector.load %arg8[%c0_27, %c0_28] : memref<2x128xf32, #tpu.memory_space<vmem>>, vector<2x128xf32>
    %38 = vector.shape_cast %5 : vector<2x128xf32> to vector<1x2x128xf32>
    %cst_29 = arith.constant dense<0.000000e+00> : vector<2x128xf32>
    %39 = vector.multi_reduction <add>, %38, %cst_29 [0] : vector<1x2x128xf32> to vector<2x128xf32>
    %40 = arith.addf %37, %39 : vector<2x128xf32>
    %c0_30 = arith.constant 0 : index
    %c0_31 = arith.constant 0 : index
    %41 = vector.load %arg8[%c0_30, %c0_31] : memref<2x128xf32, #tpu.memory_space<vmem>>, vector<2x128xf32>
    tpu.vector_store %arg8[%c0_30, %c0_31], %40 {strides = array<i32>} : memref<2x128xf32, #tpu.memory_space<vmem>>, vector<2x128xf32>,
    %c0_i32_32 = arith.constant 0 : i32
    %42 = arith.cmpi eq, %arg2, %c0_i32_32 : i32
    %43 = arith.extui %42 : i1 to i32
    %c0_i32_33 = arith.constant 0 : i32
    %44 = arith.cmpi ne, %43, %c0_i32_33 : i32
    scf.if %44 {
      %c0_34 = arith.constant 0 : index
      %c0_35 = arith.constant 0 : index
      %45 = vector.load %arg6[%c0_34, %c0_35] : memref<2x128xf32, #tpu.memory_space<vmem>>, vector<2x128xf32>
      %46 = vector.shape_cast %45 : vector<2x128xf32> to vector<1x2x128xf32>
      %cst_36 = arith.constant dense<0.000000e+00> : vector<1xf32>
      %47 = vector.multi_reduction <add>, %46, %cst_36 [1, 2] : vector<1x2x128xf32> to vector<1xf32>
      %48 = vector.shape_cast %47 : vector<1xf32> to vector<1x1x1xf32>
      %49 = vector.extract %48[0, 0, 0] : f32 from vector<1x1x1xf32>
      %c0_37 = arith.constant 0 : index
      %c0_38 = arith.constant 0 : index
      %50 = vector.load %arg7[%c0_37, %c0_38] : memref<2x128xf32, #tpu.memory_space<vmem>>, vector<2x128xf32>
      %51 = vector.shape_cast %50 : vector<2x128xf32> to vector<1x2x128xf32>
      %cst_39 = arith.constant dense<0.000000e+00> : vector<1xf32>
      %52 = vector.multi_reduction <add>, %51, %cst_39 [1, 2] : vector<1x2x128xf32> to vector<1xf32>
      %53 = vector.shape_cast %52 : vector<1xf32> to vector<1x1x1xf32>
      %54 = vector.extract %53[0, 0, 0] : f32 from vector<1x1x1xf32>
      %c0_40 = arith.constant 0 : index
      %c0_41 = arith.constant 0 : index
      %55 = vector.load %arg8[%c0_40, %c0_41] : memref<2x128xf32, #tpu.memory_space<vmem>>, vector<2x128xf32>
      %56 = vector.shape_cast %55 : vector<2x128xf32> to vector<1x2x128xf32>
      %cst_42 = arith.constant dense<0.000000e+00> : vector<1xf32>
      %57 = vector.multi_reduction <add>, %56, %cst_42 [1, 2] : vector<1x2x128xf32> to vector<1xf32>
      %58 = vector.shape_cast %57 : vector<1xf32> to vector<1x1x1xf32>
      %59 = vector.extract %58[0, 0, 0] : f32 from vector<1x1x1xf32>
      %60 = tpu.iota {dimensions = array<i32: 0>} : vector<8x128xi32>
      %c0_i32_43 = arith.constant 0 : i32
      %61 = vector.broadcast %c0_i32_43 : i32 to vector<8x128xi32>
      %62 = arith.cmpi eq, %60, %61 : vector<8x128xi32>
      %c1_i32 = arith.constant 1 : i32
      %63 = vector.broadcast %c1_i32 : i32 to vector<8x128xi32>
      %64 = arith.cmpi eq, %60, %63 : vector<8x128xi32>
      %c2_i32 = arith.constant 2 : i32
      %65 = vector.broadcast %c2_i32 : i32 to vector<8x128xi32>
      %66 = arith.cmpi eq, %60, %65 : vector<8x128xi32>
      %cst_44 = arith.constant 0.000000e+00 : f32
      %67 = vector.broadcast %59 : f32 to vector<8x128xf32>
      %68 = vector.broadcast %cst_44 : f32 to vector<8x128xf32>
      %69 = arith.select %66, %67, %68 : vector<8x128xi1>, vector<8x128xf32>
      %70 = vector.broadcast %54 : f32 to vector<8x128xf32>
      %71 = arith.select %64, %70, %69 : vector<8x128xi1>, vector<8x128xf32>
      %72 = vector.broadcast %49 : f32 to vector<8x128xf32>
      %73 = arith.select %62, %72, %71 : vector<8x128xi1>, vector<8x128xf32>
      %74 = vector.shape_cast %73 : vector<8x128xf32> to vector<1x1x8x128xf32>
      %c0_45 = arith.constant 0 : index
      %c0_46 = arith.constant 0 : index
      %c0_47 = arith.constant 0 : index
      %c0_48 = arith.constant 0 : index
      %75 = vector.load %arg5[%c0_45, %c0_46, %c0_47, %c0_48] : memref<1x1x8x128xf32, #tpu.memory_space<vmem>>, vector<1x1x8x128xf32>
      tpu.vector_store %arg5[%c0_45, %c0_46, %c0_47, %c0_48], %74 {strides = array<i32>} : memref<1x1x8x128xf32, #tpu.memory_space<vmem>>, vector<1x1x8x128xf32>,
    } else {
    }
    return
  }
  func.func @transform_0(%arg0: i32, %arg1: i32, %arg2: i32) -> (i32, i32, i32, i32) {
    %c1_i32 = arith.constant 1 : i32
    %0 = arith.muli %arg1, %c1_i32 : i32
    %1 = arith.addi %0, %arg2 : i32
    %c0_i32 = arith.constant 0 : i32
    %2 = arith.minsi %1, %c0_i32 : i32
    %c0_i32_0 = arith.constant 0 : i32
    %c0_i32_1 = arith.constant 0 : i32
    %c0_i32_2 = arith.constant 0 : i32
    return %arg0, %c0_i32_0, %2, %c0_i32_1 : i32, i32, i32, i32
  }
  func.func @transform_1(%arg0: i32, %arg1: i32, %arg2: i32) -> (i32, i32, i32, i32) {
    %c1_i32 = arith.constant 1 : i32
    %0 = arith.muli %arg1, %c1_i32 : i32
    %1 = arith.addi %0, %arg2 : i32
    %c0_i32 = arith.constant 0 : i32
    %2 = arith.minsi %1, %c0_i32 : i32
    %c0_i32_0 = arith.constant 0 : i32
    %c0_i32_1 = arith.constant 0 : i32
    %c0_i32_2 = arith.constant 0 : i32
    return %arg0, %c0_i32_0, %2, %c0_i32_1 : i32, i32, i32, i32
  }
  func.func @transform_2(%arg0: i32, %arg1: i32, %arg2: i32) -> (i32, i32, i32, i32) {
    %c0_i32 = arith.constant 0 : i32
    %c0_i32_0 = arith.constant 0 : i32
    %c0_i32_1 = arith.constant 0 : i32
    return %arg0, %arg1, %c0_i32, %c0_i32_0 : i32, i32, i32, i32
  }
}

</mosaic_0001>

<llo_original>
// kernel: tpu_custom_call.1
$region0: #{tpu_custom_call.1}
  #allocation0 [shape = 'u32[]', space=smem, size = 0x4, offset = 0x4, fixed_abs, tag = 'smem constant byte address 0x4 - core index']
  #allocation1 [shape = 'u32[72,128]{1,0:T(1,128)}', space=vmem, size = 0x9000, scoped, tag = 'internal scratch']
  #allocation2 [shape = 'f32[2,128]{1,0:T(2,128)}', space=vmem, size = 0x400, scoped, tag = 'scratch operand']
  #allocation3 [shape = 'f32[2,128]{1,0:T(2,128)}', space=vmem, size = 0x400, scoped, tag = 'scratch operand']
  #allocation4 [shape = 'f32[2,128]{1,0:T(2,128)}', space=vmem, size = 0x400, scoped, tag = 'scratch operand']
  %s0 = inlined_call_operand.hbm [shape: f32[2,4,2,128], index: 0, kind: input, shape index: {}]
  %s1 = inlined_call_operand.hbm [shape: s32[2,1,2,128], index: 1, kind: input, shape index: {}]
  %s2 = inlined_call_operand.hbm [shape: f32[2,1,8,128], index: 2, kind: output, shape index: {}]
  %s3 = sld [smem:[#allocation0]]
  $region57: #{tpu_custom_call.1} parent=0
    _
  %s5 = ssub.s32 1, %s3
  %s6 = scalar_select 0, %s5, %s3
  $region1: #{tpu_custom_call.1} parent=0
    #allocation5 [shape = 'u8[8192]{0}', space=vmem, size = 0x2000, scoped, tag = 'input window, operand 0']
    #allocation6 [shape = 's32[2]{0}', space=sflag, size = 0x8, scoped, tag = 'scoped memory for tpu_custom_call.1']
    #allocation7 [shape = 's32[2]{0}', space=sflag, size = 0x8, scoped, tag = 'scoped memory for tpu_custom_call.1']
    #allocation8 [shape = 'u8[2048]{0}', space=vmem, size = 0x800, scoped, tag = 'input window, operand 1']
    #allocation9 [shape = 's32[2]{0}', space=sflag, size = 0x8, scoped, tag = 'scoped memory for tpu_custom_call.1']
    #allocation10 [shape = 'u8[8192]{0}', space=vmem, size = 0x2000, scoped, tag = 'output window, operand 0']
    %7 = vsyncpa [#allocation6], 0
    %s8 = scalar_lea.sflag [#allocation6], 1
    %9 = vsyncpa %s8, 0
    %10 = vsyncpa [#allocation9], 0
    %s11 = scalar_lea.sflag [#allocation9], 1
    %12 = vsyncpa %s11, 0
    %13 = vsyncpa [#allocation7], 0
    %s14 = scalar_lea.sflag [#allocation7], 1
    %15 = vsyncpa %s14, 0
    loop: start=0, step=1, limit=4
    $region2: #{tpu_custom_call.1} parent=1 // loop_pre_header
      _
    $region3: #{tpu_custom_call.1} parent=1 // loop_header
      %s17 = sphi 0, %s21
      %p18 = scmp.ge.s32.totalorder %s17, 4
      %s24 = sphi 0, %s43
      %s25 = sphi 0, %s39
      %s26 = sphi 0, %s35
      %s27 = sphi 0, %s24
      %s28 = sphi 0, %s25
      %s29 = sphi 0, %s26
      %s30 = sphi 0, %s27
      %s31 = sphi 0, %s28
      %s32 = sphi 0, %s29
      %s54 = sphi 0, %s56
      %s57 = sphi 0, %s54
      %s58 = sphi 0, %s57
      %s74 = sphi 0, %s58
      %s88 = sphi 0, %s90
      %s91 = sphi 0, %s88
      %s92 = sphi 0, %s91
      %s108 = sphi 0, %s92
      %s116 = sphi 0, %s118
      %s119 = sphi 0, %s116
      %s120 = sphi 0, %s119
      %s136 = sphi 0, %s120
    $region4: #{tpu_custom_call.1} parent=1 // loop_header_branch
      %20 = sbr.rel (%p18) target = $region8
    $region5: #{tpu_custom_call.1} parent=1 // loop_body
      %s22 = ssub.s32 %s17, 1
      %s23 = ssub.s32 %s17, 2
      %s33 = sadd.s32 1, %s26
      %p34 = scmp.ge.s32.totalorder %s33, 1
      %s35 = scalar_select %p34, 0, %s33
      %s36 = sadd.s32 1, %s25
      %s37 = scalar_select %p34, %s36, %s25
      %p38 = scmp.ge.s32.totalorder %s37, 1
      %s39 = scalar_select %p38, 0, %s37
      %s40 = sadd.s32 1, %s24
      %s41 = scalar_select %p38, %s40, %s24
      %p42 = scmp.ge.s32.totalorder %s41, 2
      %s43 = scalar_select %p42, 0, %s41
      %s44 = sadd.s32 %s25, %s26
      %p45 = scmp.lt.s32.totalorder %s44, 0
      %s46 = scalar_select %p45, %s44, 0
      %s47 = sadd.s32 %s39, %s35
      %p48 = scmp.lt.s32.totalorder %s47, 0
      %s49 = scalar_select %p48, %s47, 0
      %s50 = ssub.s32 %s24, %s43
      %s51 = ssub.s32 %s46, %s49
      %s52 = sor.u32 %s50, %s51
      %p53 = scmp.eq.s32.totalorder %s52, 0
      %s55 = sadd.s32 %s54, 1
      %s56 = scalar_select %p53, %s54, %s55
      %p59 = pneg %p53
      %p60 = scmp.eq.s32.totalorder %s17, 1
      %p61 = por %p59, %p60
      %p62 = scmp.ne.s32.totalorder %s54, %s57
      %p63 = scmp.eq.s32.totalorder %s17, 0
      %p64 = por %p62, %p63
      %p65 = scmp.ne.s32.totalorder %s54, %s57
      %p66 = scmp.eq.s32.totalorder %s22, 1
      %p67 = por %p65, %p66
      %p68 = scmp.ne.s32.totalorder %s57, %s58
      %p69 = scmp.eq.s32.totalorder %s22, 0
      %p70 = por %p68, %p69
      %p71 = scmp.ne.s32.totalorder %s57, %s58
      %p72 = scmp.eq.s32.totalorder %s23, 1
      %p73 = por %p71, %p72
      %p75 = scmp.ne.s32.totalorder %s58, %s74
      %p76 = scmp.eq.s32.totalorder %s23, 0
      %p77 = por %p75, %p76
      %s78 = sadd.s32 %s25, %s26
      %p79 = scmp.lt.s32.totalorder %s78, 0
      %s80 = scalar_select %p79, %s78, 0
      %s81 = sadd.s32 %s39, %s35
      %p82 = scmp.lt.s32.totalorder %s81, 0
      %s83 = scalar_select %p82, %s81, 0
      %s84 = ssub.s32 %s24, %s43
      %s85 = ssub.s32 %s80, %s83
      %s86 = sor.u32 %s84, %s85
      %p87 = scmp.eq.s32.totalorder %s86, 0
      %s89 = sadd.s32 %s88, 1
      %s90 = scalar_select %p87, %s88, %s89
      %p93 = pneg %p87
      %p94 = scmp.eq.s32.totalorder %s17, 1
      %p95 = por %p93, %p94
      %p96 = scmp.ne.s32.totalorder %s88, %s91
      %p97 = scmp.eq.s32.totalorder %s17, 0
      %p98 = por %p96, %p97
      %p99 = scmp.ne.s32.totalorder %s88, %s91
      %p100 = scmp.eq.s32.totalorder %s22, 1
      %p101 = por %p99, %p100
      %p102 = scmp.ne.s32.totalorder %s91, %s92
      %p103 = scmp.eq.s32.totalorder %s22, 0
      %p104 = por %p102, %p103
      %p105 = scmp.ne.s32.totalorder %s91, %s92
      %p106 = scmp.eq.s32.totalorder %s23, 1
      %p107 = por %p105, %p106
      %p109 = scmp.ne.s32.totalorder %s92, %s108
      %p110 = scmp.eq.s32.totalorder %s23, 0
      %p111 = por %p109, %p110
      %s112 = ssub.s32 %s24, %s43
      %s113 = ssub.s32 %s25, %s39
      %s114 = sor.u32 %s112, %s113
      %p115 = scmp.eq.s32.totalorder %s114, 0
      %s117 = sadd.s32 %s116, 1
      %s118 = scalar_select %p115, %s116, %s117
      %p121 = pneg %p115
      %p122 = scmp.eq.s32.totalorder %s17, 1
      %p123 = por %p121, %p122
      %p124 = scmp.ne.s32.totalorder %s116, %s119
      %p125 = scmp.eq.s32.totalorder %s17, 0
      %p126 = por %p124, %p125
      %p127 = scmp.ne.s32.totalorder %s116, %s119
      %p128 = scmp.eq.s32.totalorder %s22, 1
      %p129 = por %p127, %p128
      %p130 = scmp.ne.s32.totalorder %s119, %s120
      %p131 = scmp.eq.s32.totalorder %s22, 0
      %p132 = por %p130, %p131
      %p133 = scmp.ne.s32.totalorder %s119, %s120
      %p134 = scmp.eq.s32.totalorder %s23, 1
      %p135 = por %p133, %p134
      %p137 = scmp.ne.s32.totalorder %s120, %s136
      %p138 = scmp.eq.s32.totalorder %s23, 0
      %p139 = por %p137, %p138
      %p140 = scmp.le.s32.totalorder 1, %s17
      %p141 = scmp.lt.s32.totalorder %s17, 3
      %p142 = pnand %p140, %p141
      %p143 = pneg %p142
      // Predicated region
      $region9: #{tpu_custom_call.1} parent=5 // pred_check
        _
      $region10: #{tpu_custom_call.1} parent=5 // pred_check_branch
        %145 = sbr.rel (%p142) target = $region12
      $region11: #{tpu_custom_call.1} parent=5 // pred_region
        %s146 = ssub.s32 %s17, 1
      $region12: #{tpu_custom_call.1} parent=5 // pred_fallthru
        _
      %p147 = scmp.lt.s32.totalorder %s17, 2
      // Predicated region
      $region13: #{tpu_custom_call.1} parent=5 // pred_check
        %p148 = pneg %p147
      $region14: #{tpu_custom_call.1} parent=5 // pred_check_branch
        %150 = sbr.rel (%p148) target = $region16
      $region15: #{tpu_custom_call.1} parent=5 // pred_region
        // Predicated region
        $region17: #{tpu_custom_call.1} parent=15 // pred_check
          %p151 = pneg %p64
        $region18: #{tpu_custom_call.1} parent=15 // pred_check_branch
          %153 = sbr.rel (%p151) target = $region20
        $region19: #{tpu_custom_call.1} parent=15 // pred_region
          %s154 = sand.u32 %s54, 1
          %s155 = scalar_lea.sflag [#allocation6], %s154
          %s156 = sand.u32 %s54, 1
          %s157 = smul.addr %s156, 8
          %s158 = scalar_lea.vmem [#allocation5], %s157
          %s159 = sadd.s32 %s25, %s26
          %p160 = scmp.lt.s32.totalorder %s159, 0
          %s161 = scalar_select %p160, %s159, 0
          %163 = vsyncadd %s155, 0
          %s164 = smul.addr %s24, 4
          %s165 = sadd.s32 %s161, %s164
          %s166 = smul.addr %s165, 2
          %s167 = scalar_lea.hbm %s0, %s166
          %s168 = sshll.u32 %s167, 4
          %s169 = int_to_ptr.hbm [resolvable:$true] %s168
          %s170 = sshll.u32 %s158, 4
          %s171 = int_to_ptr.vmem [resolvable:$true] %s170
          %176 = dma.hbm_to_vmem [thread:$0]  %s169, 128, %s171, %s155, 32, 32, 2
        $region20: #{tpu_custom_call.1} parent=15 // pred_fallthru
          _
        // Predicated region
        $region21: #{tpu_custom_call.1} parent=15 // pred_check
          %p177 = pneg %p98
        $region22: #{tpu_custom_call.1} parent=15 // pred_check_branch
          %179 = sbr.rel (%p177) target = $region24
        $region23: #{tpu_custom_call.1} parent=15 // pred_region
          %s180 = sand.u32 %s88, 1
          %s181 = scalar_lea.sflag [#allocation9], %s180
          %s182 = sand.u32 %s88, 1
          %s183 = smul.addr %s182, 2
          %s184 = scalar_lea.vmem [#allocation8], %s183
          %s185 = sadd.s32 %s25, %s26
          %p186 = scmp.lt.s32.totalorder %s185, 0
          %s187 = scalar_select %p186, %s185, 0
          %189 = vsyncadd %s181, 0
          %s190 = sadd.s32 %s187, %s24
          %s191 = smul.addr %s190, 2
          %s192 = scalar_lea.hbm %s1, %s191
          %s194 = sshll.u32 %s192, 4
          %s195 = int_to_ptr.hbm [resolvable:$true] %s194
          %s196 = sshll.u32 %s184, 4
          %s197 = int_to_ptr.vmem [resolvable:$true] %s196
          %199 = dma.hbm_to_vmem [thread:$0]  %s195, 32, %s197, %s181
        $region24: #{tpu_custom_call.1} parent=15 // pred_fallthru
          _
      $region16: #{tpu_custom_call.1} parent=5 // pred_fallthru
        _
      %p200 = scmp.le.s32.totalorder 1, %s17
      %p201 = scmp.lt.s32.totalorder %s17, 3
      %p202 = pnand %p200, %p201
      %p203 = pneg %p202
      // Predicated region
      $region25: #{tpu_custom_call.1} parent=5 // pred_check
        _
      $region26: #{tpu_custom_call.1} parent=5 // pred_check_branch
        %205 = sbr.rel (%p202) target = $region28
      $region27: #{tpu_custom_call.1} parent=5 // pred_region
        %s206 = ssub.s32 %s17, 1
        %s207 = sand.u32 %s57, 1
        %s208 = scalar_lea.sflag [#allocation6], %s207
        %s209 = sand.u32 %s57, 1
        %s210 = smul.addr %s209, 8
        %s211 = scalar_lea.vmem [#allocation5], %s210
        // Predicated region
        $region29: #{tpu_custom_call.1} parent=27 // pred_check
          %p212 = pneg %p70
        $region30: #{tpu_custom_call.1} parent=27 // pred_check_branch
          %214 = sbr.rel (%p212) target = $region32
        $region31: #{tpu_custom_call.1} parent=27 // pred_region
          %216 = dma.done %s208, 128
        $region32: #{tpu_custom_call.1} parent=27 // pred_fallthru
          _
        %s217 = sand.u32 %s91, 1
        %s218 = scalar_lea.sflag [#allocation9], %s217
        %s219 = sand.u32 %s91, 1
        %s220 = smul.addr %s219, 2
        %s221 = scalar_lea.vmem [#allocation8], %s220
        // Predicated region
        $region33: #{tpu_custom_call.1} parent=27 // pred_check
          %p222 = pneg %p104
        $region34: #{tpu_custom_call.1} parent=27 // pred_check_branch
          %224 = sbr.rel (%p222) target = $region36
        $region35: #{tpu_custom_call.1} parent=27 // pred_region
          %226 = dma.done %s218, 32
        $region36: #{tpu_custom_call.1} parent=27 // pred_fallthru
          _
        %s227 = sand.u32 %s57, 1
        %s228 = scalar_lea.sflag [#allocation6], %s227
        %s229 = sand.u32 %s57, 1
        %s230 = smul.addr %s229, 8
        %s231 = scalar_lea.vmem [#allocation5], %s230
        %p232 = pneg %p70
        %p233 = pneg %p67
        %s234 = sand.u32 %s91, 1
        %s235 = scalar_lea.sflag [#allocation9], %s234
        %s236 = sand.u32 %s91, 1
        %s237 = smul.addr %s236, 2
        %s238 = scalar_lea.vmem [#allocation8], %s237
        %p239 = pneg %p104
        %p240 = pneg %p101
        %p241 = pneg %p132
        %p242 = pneg %p129
        %s243 = sand.u32 %s119, 1
        %s244 = scalar_lea.sflag [#allocation7], %s243
        %s245 = sand.u32 %s119, 1
        %s246 = smul.addr %s245, 8
        %s247 = scalar_lea.vmem [#allocation10], %s246
        %s248 = sadd.s32 %s28, %s29
        %p249 = scmp.lt.s32.totalorder %s248, 0
        %s250 = scalar_select %p249, %s248, 0
        %s251 = sadd.s32 %s28, %s29
        %p252 = scmp.lt.s32.totalorder %s251, 0
        %s253 = scalar_select %p252, %s251, 0
        %p254 = scmp.eq.s32.totalorder %s29, 0
        // Predicated region
        $region37: #{tpu_custom_call.1} parent=27 // pred_check
          %p255 = pneg %p254
        $region38: #{tpu_custom_call.1} parent=27 // pred_check_branch
          %257 = sbr.rel (%p255) target = $region40
        $region39: #{tpu_custom_call.1} parent=27 // pred_region
          %258 = vst [vmem:[#allocation2] sm:$0x3] 0.0
          %259 = vst [vmem:[#allocation3] sm:$0x3] 0.0
          %260 = vst [vmem:[#allocation4] sm:$0x3] 0.0
        $region40: #{tpu_custom_call.1} parent=27 // pred_fallthru
          _
        %v261 = vld [vmem:[%s221] sm:$0x3]
        %v262 = vcvt.s32.f32 %v261
        %s263 = scalar_lea.vmem %s211, 2 [#allocation5]
        %v264 = vld [vmem:[%s263] sm:$0x3]
        %v265 = vld [vmem:[%s211] sm:$0x3]
        %v266 = vsub.f32 %v265, %v264
        %v267 = vmul.f32 %v266, 1.442695
        %v268 = vpow.pop %v267
        %v269 = vadd.f32 %v268, 1.0
        %s270 = scalar_lea.vmem %s211, 4 [#allocation5]
        %v271 = vld [vmem:[%s270] sm:$0x3]
        %v272 = vsub.f32 %v271, %v264
        %v273 = vmul.f32 %v272, 1.442695
        %v274 = vpow.pop %v273
        %v275 = vadd.f32 %v269, %v274
        %s276 = scalar_lea.vmem %s211, 6 [#allocation5]
        %v277 = vld [vmem:[%s276] sm:$0x3]
        %v278 = vsub.f32 %v277, %v264
        %v279 = vmul.f32 %v278, 1.442695
        %v280 = vpow.pop %v279
        %v281 = vadd.f32 %v275, %v280
        %v282 = vrcp.pop %v281
        %v283 = vmul.f32 %v281, %v282
        %v284 = vsub.f32 1.0, %v283
        %v285 = vmul.f32 %v282, %v284
        %v286 = vadd.f32 %v282, %v285
        %vm287 = vweird.f32 %v281
        %vm288 = vweird.f32 %v282
        %vm289 = vmor %vm287, %vm288
        %v290 = vsel %vm289, %v282, %v286
        %v291 = vand.u32 2147483647, %v281
        %vm292 = vcmp.eq.f32.partialorder %v291, 8.507059e+37
        %v293 = vand.u32 %v281, 2147483648
        %v294 = vor.u32 1.1754944e-38, %v293
        %v295 = vsel %vm292, %v294, %v290
        %v296 = vld [vmem:[#allocation2] sm:$0x3]
        %v297 = vmul.f32 %v295, %v262
        %v298 = vadd.f32 %v297, 0.0
        %v299 = vadd.f32 %v296, %v298
        %300 = vst [vmem:[#allocation2] sm:$0x3] %v299
        %v301 = vld [vmem:[#allocation3] sm:$0x3]
        %v302 = vmul.f32 %v295, %v295
        %v303 = vadd.f32 %v302, 0.0
        %v304 = vadd.f32 %v301, %v303
        %305 = vst [vmem:[#allocation3] sm:$0x3] %v304
        %v306 = vld [vmem:[#allocation4] sm:$0x3]
        %v307 = vadd.f32 %v262, 0.0
        %v308 = vadd.f32 %v306, %v307
        %309 = vst [vmem:[#allocation4] sm:$0x3] %v308
        // Predicated region
        $region41: #{tpu_custom_call.1} parent=27 // pred_check
          %p310 = pneg %p254
        $region42: #{tpu_custom_call.1} parent=27 // pred_check_branch
          %312 = sbr.rel (%p310) target = $region44
        $region43: #{tpu_custom_call.1} parent=27 // pred_region
          %v313 = vld [vmem:[#allocation2] sm:$0x3]
          %vm314 = vcmask 1041408
          %v315 = vsel %vm314, %v313, 0.0
          %316 = vadd.xlane.f32.xlu0 %v315
          %v317 = vpop.xlane.xlu0 %316
          %v318 = vrot.slane %v317, 4
          %v319 = vadd.f32 %v317, %v318
          %v320 = vrot.slane %v319, 2
          %v321 = vadd.f32 %v319, %v320
          %v322 = vrot.slane %v321, 1
          %v323 = vadd.f32 %v321, %v322
          %s324 = vtos %v323
          %v325 = vld [vmem:[#allocation3] sm:$0x3]
          %v326 = vsel %vm314, %v325, 0.0
          %327 = vadd.xlane.f32.xlu0 %v326
          %v328 = vpop.xlane.xlu0 %327
          %v329 = vrot.slane %v328, 4
          %v330 = vadd.f32 %v328, %v329
          %v331 = vrot.slane %v330, 2
          %v332 = vadd.f32 %v330, %v331
          %v333 = vrot.slane %v332, 1
          %v334 = vadd.f32 %v332, %v333
          %s335 = vtos %v334
          %v336 = vld [vmem:[#allocation4] sm:$0x3]
          %v337 = vsel %vm314, %v336, 0.0
          %338 = vadd.xlane.f32.xlu0 %v337
          %v339 = vpop.xlane.xlu0 %338
          %v340 = vrot.slane %v339, 4
          %v341 = vadd.f32 %v339, %v340
          %v342 = vrot.slane %v341, 2
          %v343 = vadd.f32 %v341, %v342
          %v344 = vrot.slane %v343, 1
          %v345 = vadd.f32 %v343, %v344
          %s346 = vtos %v345
          %v347 = vlaneseq
          %v348 = vshrl.u32 %v347, 7
          %vm349 = vcmp.eq.s32.totalorder %v348, 0
          %vm350 = vcmp.eq.s32.totalorder %v348, 1
          %vm351 = vcmp.eq.s32.totalorder %v348, 2
          %v352 = vstv %s346
          %v353 = vsel %vm351, %v352, 0.0
          %v354 = vstv %s335
          %v355 = vsel %vm350, %v354, %v353
          %v356 = vstv %s324
          %v357 = vsel %vm349, %v356, %v355
          %358 = vst [vmem:[%s247] sm:$0xff] %v357
        $region44: #{tpu_custom_call.1} parent=27 // pred_fallthru
          _
        %s359 = sand.u32 %s119, 1
        %s360 = scalar_lea.sflag [#allocation7], %s359
        %s361 = sand.u32 %s119, 1
        %s362 = smul.addr %s361, 8
        %s363 = scalar_lea.vmem [#allocation10], %s362
        // Predicated region
        $region45: #{tpu_custom_call.1} parent=27 // pred_check
          %p364 = pneg %p129
        $region46: #{tpu_custom_call.1} parent=27 // pred_check_branch
          %366 = sbr.rel (%p364) target = $region48
        $region47: #{tpu_custom_call.1} parent=27 // pred_region
          %368 = vsyncadd %s360, 0
          %s369 = sadd.s32 %s28, %s27
          %s370 = smul.addr %s369, 8
          %s371 = scalar_lea.hbm %s2, %s370
          %s373 = sshll.u32 %s363, 4
          %s374 = int_to_ptr.vmem [resolvable:$true] %s373
          %s375 = sshll.u32 %s371, 4
          %s376 = int_to_ptr.hbm [resolvable:$true] %s375
          %378 = dma.vmem_to_hbm [thread:$0]  %s374, 128, %s376, %s360
        $region48: #{tpu_custom_call.1} parent=27 // pred_fallthru
          _
      $region28: #{tpu_custom_call.1} parent=5 // pred_fallthru
        _
      %p379 = scmp.le.s32.totalorder 2, %s17
      // Predicated region
      $region49: #{tpu_custom_call.1} parent=5 // pred_check
        %p380 = pneg %p379
      $region50: #{tpu_custom_call.1} parent=5 // pred_check_branch
        %382 = sbr.rel (%p380) target = $region52
      $region51: #{tpu_custom_call.1} parent=5 // pred_region
        %s383 = ssub.s32 %s17, 2
        // Predicated region
        $region53: #{tpu_custom_call.1} parent=51 // pred_check
          %p384 = pneg %p135
        $region54: #{tpu_custom_call.1} parent=51 // pred_check_branch
          %386 = sbr.rel (%p384) target = $region56
        $region55: #{tpu_custom_call.1} parent=51 // pred_region
          %s387 = sand.u32 %s120, 1
          %s388 = scalar_lea.sflag [#allocation7], %s387
          %s389 = sand.u32 %s120, 1
          %s390 = smul.addr %s389, 8
          %s391 = scalar_lea.vmem [#allocation10], %s390
          %393 = dma.done %s388, 128
        $region56: #{tpu_custom_call.1} parent=51 // pred_fallthru
          _
      $region52: #{tpu_custom_call.1} parent=5 // pred_fallthru
        _
    $region6: #{tpu_custom_call.1} parent=1 // loop_footer
      %s21 = sadd.s32 1, %s17
    $region7: #{tpu_custom_call.1} parent=1 // loop_footer_branch
      %16 = sbr.rel target = $region3
    $region8: #{tpu_custom_call.1} parent=1 // loop_exit
      _
    %394 = vsyncpa [#allocation6], 1
    %s395 = scalar_lea.sflag [#allocation6], 1
    %396 = vsyncpa %s395, 1
    %397 = vsyncpa [#allocation9], 1
    %s398 = scalar_lea.sflag [#allocation9], 1
    %399 = vsyncpa %s398, 1
    %400 = vsyncpa [#allocation7], 1
    %s401 = scalar_lea.sflag [#allocation7], 1
    %402 = vsyncpa %s401, 1

</llo_original>
